<compile_context>
chip_gen: v6e
topology: v6e:2x2x1
jax: 0.10.0
libtpu: 0.0.40
codegen_flags: <defaults>
</compile_context>

<pallas_src>
import functools

import jax
import jax.numpy as jnp
from jax.experimental import pallas as pl
from jax.experimental.pallas import tpu as pltpu

LANE = 128
MAX_TILE_ROWS = 4096            # 4096 x 128 f32 = 2 MiB per input block
MIN_TILE_ROWS = 16              # (16,128) packing tile -> bf16-safe, f32-safe
VMEM_LIMIT_BYTES = 32 * 1024 * 1024


def _round_down(x, m):
    return (x // m) * m


def _weighted_bce(x, t, w):
    # Numerically stable BCE-with-logits (reduction='none'), matches PyTorch.
    bce = jnp.maximum(x, 0.0) - x * t + jnp.log1p(jnp.exp(-jnp.abs(x)))
    return w * bce


def _partial_sum_kernel(pred_ref, tgt_ref, prob_ref, out_ref, *,
                        tile_rows, steps_per_core, rows_valid, emit_mask):
    c = pl.program_id(0)          # partial / TensorCore index ("parallel")
    i = pl.program_id(1)          # streaming step over row blocks ("arbitrary")

    @pl.when(i == 0)
    def _():
        out_ref[...] = jnp.zeros_like(out_ref)

    x = pred_ref[...].astype(jnp.float32)
    t = tgt_ref[...].astype(jnp.float32)
    w = 1.0 - prob_ref[...].astype(jnp.float32)
    weighted = _weighted_bce(x, t, w)

    def _accumulate(vals):
        # (tile_rows,128) -> (tile_rows//8, 8, 128) -> vreg-wise adds -> (1,8,128)
        out_ref[...] += jnp.sum(vals.reshape(tile_rows // 8, 8, LANE), axis=0)[None]

    if emit_mask:
        # Mask only the (statically known, at most two per partial) ragged or
        # duplicated blocks; every full block takes the unmasked branch so the
        # iota / compare / select cost is not paid per step.
        # Row-level index math: fits int32 for rows < 2**31 (n < 2**38 elements).
        block_row0 = (c * steps_per_core + i) * tile_rows
        needs_mask = block_row0 + tile_rows > rows_valid

        @pl.when(jnp.logical_not(needs_mask))
        def _():
            _accumulate(weighted)

        @pl.when(needs_mask)
        def _():
            row_ids = jax.lax.broadcasted_iota(jnp.int32, (tile_rows, LANE), 0)
            valid = (block_row0 + row_ids) < rows_valid
            # True select (not multiply-by-mask): garbage rows may hold NaN/Inf.
            _accumulate(jnp.where(valid, weighted, jnp.float32(0.0)))
    else:
        _accumulate(weighted)


def _weighted_bce_sum_2d(pred2d, tgt2d, prob2d):
    """Sum of (1-p)*BCE(x,t) over a (rows, 128) view, via the Pallas kernel."""
    rows = pred2d.shape[0]
    tile_rows = min(MAX_TILE_ROWS, _round_down(rows, MIN_TILE_ROWS))
    total_blocks = pl.cdiv(rows, tile_rows)

    # Shard row blocks across the two TensorCores (v7x megacore); a size-1
    # "parallel" axis when there is only one block keeps tiny inputs cheap.
    num_partials = 2 if total_blocks >= 2 else 1
    steps_per_core = pl.cdiv(total_blocks, num_partials)

    # Mask is needed only for the ragged last block and/or the (at most one)
    # duplicated block created by the clamped two-core split.
    emit_mask = (rows % tile_rows != 0) or (num_partials * steps_per_core != total_blocks)

    def in_map(c, i):
        # Clamp so the (at most one) excess block re-reads the last valid block;
        # its contribution is fully masked out in-kernel (no double counting).
        return (jnp.minimum(c * steps_per_core + i, total_blocks - 1), 0)

    tile_spec = pl.BlockSpec((tile_rows, LANE), in_map)
    kernel = functools.partial(
        _partial_sum_kernel,
        tile_rows=tile_rows,
        steps_per_core=steps_per_core,
        rows_valid=rows,
        emit_mask=emit_mask,
    )

    partials = pl.pallas_call(
        kernel,
        out_shape=jax.ShapeDtypeStruct((num_partials, 8, LANE), jnp.float32),
        grid_spec=pltpu.PrefetchScalarGridSpec(
            num_scalar_prefetch=0,
            grid=(num_partials, steps_per_core),
            in_specs=[tile_spec, tile_spec, tile_spec],
            out_specs=pl.BlockSpec((1, 8, LANE), lambda c, i: (c, 0, 0)),
        ),
        compiler_params=pltpu.CompilerParams(
            dimension_semantics=("parallel", "arbitrary"),
            vmem_limit_bytes=VMEM_LIMIT_BYTES,
        ),
    )(pred2d, tgt2d, prob2d)

    # Tiny lane-dense output: final cross-lane reduce done once, in the wrapper.
    return jnp.sum(partials)


def noise_regularized_loss(predictions, target, probabilities, lam=1.0):
    """Pallas equivalent of noise_regularized_loss.forward. Returns scalar f32."""
    pred = jnp.ravel(predictions)
    tgt = jnp.ravel(target)
    prob = jnp.ravel(probabilities)
    n = pred.shape[0]

    full_rows = n // LANE
    n_main = full_rows * LANE
    rem = n - n_main

    total = jnp.float32(0.0)

    if full_rows < MIN_TILE_ROWS:
        # Fewer than 2048 elements: not worth a kernel launch; plain jnp.
        x = pred.astype(jnp.float32)
        t = tgt.astype(jnp.float32)
        w = 1.0 - prob.astype(jnp.float32)
        total = jnp.sum(_weighted_bce(x, t, w))
    else:
        if rem:
            # <128-element tail handled in the wrapper; avoids padding (and
            # re-copying) all three O(n) streams just for the 2-D lane view.
            x = pred[n_main:].astype(jnp.float32)
            t = tgt[n_main:].astype(jnp.float32)
            w = 1.0 - prob[n_main:].astype(jnp.float32)
            total = total + jnp.sum(_weighted_bce(x, t, w))
            pred2d = pred[:n_main].reshape(full_rows, LANE)
            tgt2d = tgt[:n_main].reshape(full_rows, LANE)
            prob2d = prob[:n_main].reshape(full_rows, LANE)
        else:
            pred2d = pred.reshape(full_rows, LANE)
            tgt2d = tgt.reshape(full_rows, LANE)
            prob2d = prob.reshape(full_rows, LANE)

        total = total + _weighted_bce_sum_2d(pred2d, tgt2d, prob2d)

    return (jnp.float32(lam) * total) / jnp.float32(n)


def _reference(predictions, target, probabilities, lam=1.0):
    x = jnp.ravel(predictions).astype(jnp.float32)
    t = jnp.ravel(target).astype(jnp.float32)
    p = jnp.ravel(probabilities).astype(jnp.float32)
    return jnp.mean(jnp.float32(lam) * (1.0 - p) * _weighted_bce(x, t, 1.0 - p) /
                    jnp.where(1.0 - p == 0.0, 1.0, 1.0 - p)) if False else jnp.mean(
        jnp.float32(lam) * (1.0 - p) *
        (jnp.maximum(x, 0.0) - x * t + jnp.log1p(jnp.exp(-jnp.abs(x)))))


if __name__ == "__main__":
    key = jax.random.PRNGKey(0)

    def make_inputs(shape, key):
        k1, k2, k3 = jax.random.split(key, 3)
        predictions = jax.random.normal(k1, shape, dtype=jnp.float32)
        target = (jax.random.uniform(k2, shape) > 0.5).astype(jnp.float32)
        probabilities = jax.random.uniform(k3, shape, dtype=jnp.float32)
        return predictions, target, probabilities

    k_a, k_b = jax.random.split(key)
    lam = 1.0

    # Case 1: n = 2048 (multiple of 128) -> pure kernel path, no masking needed.
    pred_a, tgt_a, prob_a = make_inputs((2, 4, 16, 16), k_a)
    loss_a = jax.block_until_ready(noise_regularized_loss(pred_a, tgt_a, prob_a, lam))
    ref_a = jax.block_until_ready(_reference(pred_a, tgt_a, prob_a, lam))
    assert jnp.allclose(loss_a, ref_a, atol=1e-5, rtol=1e-5), (loss_a, ref_a)

    # Case 2: n = 4232 (not a multiple of 128) -> kernel + in-kernel ragged-block
    # mask + wrapper tail path.
    pred_b, tgt_b, prob_b = make_inputs((2, 4, 23, 23), k_b)
    loss_b = jax.block_until_ready(noise_regularized_loss(pred_b, tgt_b, prob_b, 0.5))
    ref_b = jax.block_until_ready(_reference(pred_b, tgt_b, prob_b, 0.5))
    assert jnp.allclose(loss_b, ref_b, atol=1e-5, rtol=1e-5), (loss_b, ref_b)

    print("KERNEL_OK")
</pallas_src>

<mosaic_0001>
module attributes {stable_mosaic.version = 11 : i64} {
  func.func @_partial_sum_kernel(%arg0: i32, %arg1: i32, %arg2: memref<16x128xf32, #tpu.memory_space<vmem>>, %arg3: memref<16x128xf32, #tpu.memory_space<vmem>>, %arg4: memref<16x128xf32, #tpu.memory_space<vmem>>, %arg5: memref<1x8x128xf32, #tpu.memory_space<vmem>>) attributes {dimension_semantics = [#tpu.dimension_semantics<parallel>, #tpu.dimension_semantics<arbitrary>], iteration_bounds = array<i64: 1, 1>, scalar_prefetch = 0 : i64, scratch_operands = 0 : i64, tpu.core_type = #tpu.core_type<tc>, window_params = [{transform_indices = @transform_0, window_bounds = array<i64: 16, 128>}, {transform_indices = @transform_1, window_bounds = array<i64: 16, 128>}, {transform_indices = @transform_2, window_bounds = array<i64: 16, 128>}, {transform_indices = @transform_3, window_bounds = array<i64: 1, 8, 128>}]} {
    %c0_i32 = arith.constant 0 : i32
    %0 = arith.cmpi eq, %arg1, %c0_i32 : i32
    %1 = arith.extui %0 : i1 to i32
    %c0_i32_0 = arith.constant 0 : i32
    %2 = arith.cmpi ne, %1, %c0_i32_0 : i32
    scf.if %2 {
      %cst_15 = arith.constant 0.000000e+00 : f32
      %25 = vector.broadcast %cst_15 : f32 to vector<1x8x128xf32>
      %c0_16 = arith.constant 0 : index
      %c0_17 = arith.constant 0 : index
      %c0_18 = arith.constant 0 : index
      %26 = vector.load %arg5[%c0_16, %c0_17, %c0_18] : memref<1x8x128xf32, #tpu.memory_space<vmem>>, vector<1x8x128xf32>
      tpu.vector_store %arg5[%c0_16, %c0_17, %c0_18], %25 {strides = array<i32>} : memref<1x8x128xf32, #tpu.memory_space<vmem>>, vector<1x8x128xf32>,
    } else {
    }
    %c0 = arith.constant 0 : index
    %c0_1 = arith.constant 0 : index
    %3 = vector.load %arg2[%c0, %c0_1] : memref<16x128xf32, #tpu.memory_space<vmem>>, vector<16x128xf32>
    %c0_2 = arith.constant 0 : index
    %c0_3 = arith.constant 0 : index
    %4 = vector.load %arg3[%c0_2, %c0_3] : memref<16x128xf32, #tpu.memory_space<vmem>>, vector<16x128xf32>
    %c0_4 = arith.constant 0 : index
    %c0_5 = arith.constant 0 : index
    %5 = vector.load %arg4[%c0_4, %c0_5] : memref<16x128xf32, #tpu.memory_space<vmem>>, vector<16x128xf32>
    %cst = arith.constant 1.000000e+00 : f32
    %6 = vector.broadcast %cst : f32 to vector<16x128xf32>
    %7 = arith.subf %6, %5 : vector<16x128xf32>
    %cst_6 = arith.constant 0.000000e+00 : f32
    %8 = vector.broadcast %cst_6 : f32 to vector<16x128xf32>
    %9 = arith.maximumf %3, %8 : vector<16x128xf32>
    %10 = arith.mulf %3, %4 : vector<16x128xf32>
    %11 = arith.subf %9, %10 : vector<16x128xf32>
    %12 = math.absf %3 : vector<16x128xf32>
    %cst_7 = arith.constant 0.000000e+00 : f32
    %13 = vector.broadcast %cst_7 : f32 to vector<16x128xf32>
    %14 = arith.subf %13, %12 : vector<16x128xf32>
    %15 = math.exp %14 : vector<16x128xf32>
    %16 = math.log1p %15 : vector<16x128xf32>
    %17 = arith.addf %11, %16 : vector<16x128xf32>
    %18 = arith.mulf %7, %17 : vector<16x128xf32>
    %c0_8 = arith.constant 0 : index
    %c0_9 = arith.constant 0 : index
    %c0_10 = arith.constant 0 : index
    %19 = vector.load %arg5[%c0_8, %c0_9, %c0_10] : memref<1x8x128xf32, #tpu.memory_space<vmem>>, vector<1x8x128xf32>
    %20 = vector.shape_cast %18 : vector<16x128xf32> to vector<2x8x128xf32>
    %cst_11 = arith.constant dense<0.000000e+00> : vector<8x128xf32>
    %21 = vector.multi_reduction <add>, %20, %cst_11 [0] : vector<2x8x128xf32> to vector<8x128xf32>
    %22 = vector.shape_cast %21 : vector<8x128xf32> to vector<1x8x128xf32>
    %23 = arith.addf %19, %22 : vector<1x8x128xf32>
    %c0_12 = arith.constant 0 : index
    %c0_13 = arith.constant 0 : index
    %c0_14 = arith.constant 0 : index
    %24 = vector.load %arg5[%c0_12, %c0_13, %c0_14] : memref<1x8x128xf32, #tpu.memory_space<vmem>>, vector<1x8x128xf32>
    tpu.vector_store %arg5[%c0_12, %c0_13, %c0_14], %23 {strides = array<i32>} : memref<1x8x128xf32, #tpu.memory_space<vmem>>, vector<1x8x128xf32>,
    return
  }
  func.func @transform_0(%arg0: i32, %arg1: i32) -> (i32, i32) {
    %c1_i32 = arith.constant 1 : i32
    %0 = arith.muli %arg0, %c1_i32 : i32
    %1 = arith.addi %0, %arg1 : i32
    %c0_i32 = arith.constant 0 : i32
    %2 = arith.minsi %1, %c0_i32 : i32
    %c0_i32_0 = arith.constant 0 : i32
    %c0_i32_1 = arith.constant 0 : i32
    return %2, %c0_i32_0 : i32, i32
  }
  func.func @transform_1(%arg0: i32, %arg1: i32) -> (i32, i32) {
    %c1_i32 = arith.constant 1 : i32
    %0 = arith.muli %arg0, %c1_i32 : i32
    %1 = arith.addi %0, %arg1 : i32
    %c0_i32 = arith.constant 0 : i32
    %2 = arith.minsi %1, %c0_i32 : i32
    %c0_i32_0 = arith.constant 0 : i32
    %c0_i32_1 = arith.constant 0 : i32
    return %2, %c0_i32_0 : i32, i32
  }
  func.func @transform_2(%arg0: i32, %arg1: i32) -> (i32, i32) {
    %c1_i32 = arith.constant 1 : i32
    %0 = arith.muli %arg0, %c1_i32 : i32
    %1 = arith.addi %0, %arg1 : i32
    %c0_i32 = arith.constant 0 : i32
    %2 = arith.minsi %1, %c0_i32 : i32
    %c0_i32_0 = arith.constant 0 : i32
    %c0_i32_1 = arith.constant 0 : i32
    return %2, %c0_i32_0 : i32, i32
  }
  func.func @transform_3(%arg0: i32, %arg1: i32) -> (i32, i32, i32) {
    %c0_i32 = arith.constant 0 : i32
    %c0_i32_0 = arith.constant 0 : i32
    %c0_i32_1 = arith.constant 0 : i32
    return %arg0, %c0_i32, %c0_i32_0 : i32, i32, i32
  }
}

</mosaic_0001>

<llo_original>
// kernel: tpu_custom_call.1
$region0: #{tpu_custom_call.1}
  #allocation0 [shape = 'u32[]', space=smem, size = 0x4, offset = 0x4, fixed_abs, tag = 'smem constant byte address 0x4 - core index']
  #allocation1 [shape = 'u32[144,128]{1,0:T(1,128)}', space=vmem, size = 0x12000, scoped, tag = 'internal scratch']
  %s0 = inlined_call_operand.hbm [shape: f32[16,128], index: 0, kind: input, shape index: {}]
  %s1 = inlined_call_operand.hbm [shape: f32[16,128], index: 1, kind: input, shape index: {}]
  %s2 = inlined_call_operand.hbm [shape: f32[16,128], index: 2, kind: input, shape index: {}]
  %s3 = inlined_call_operand.hbm [shape: f32[1,8,128], index: 3, kind: output, shape index: {}]
  %s4 = sld [smem:[#allocation0]]
  $region38: #{tpu_custom_call.1} parent=0
    _
  %s6 = ssub.s32 1, %s4
  %s7 = scalar_select 0, %s6, %s4
  $region1: #{tpu_custom_call.1} parent=0
    #allocation2 [shape = 'u8[8192]{0}', space=vmem, size = 0x2000, scoped, tag = 'input window, operand 0, single buffered']
    #allocation3 [shape = 's32[1]{0}', space=sflag, size = 0x4, scoped, tag = 'scoped memory for tpu_custom_call.1']
    #allocation4 [shape = 's32[1]{0}', space=sflag, size = 0x4, scoped, tag = 'scoped memory for tpu_custom_call.1']
    #allocation5 [shape = 'u8[8192]{0}', space=vmem, size = 0x2000, scoped, tag = 'input window, operand 1, single buffered']
    #allocation6 [shape = 's32[1]{0}', space=sflag, size = 0x4, scoped, tag = 'scoped memory for tpu_custom_call.1']
    #allocation7 [shape = 'u8[8192]{0}', space=vmem, size = 0x2000, scoped, tag = 'input window, operand 2, single buffered']
    #allocation8 [shape = 'u8[4096]{0}', space=vmem, size = 0x1000, scoped, tag = 'output window, operand 0, single buffered']
    %8 = vsyncpa [#allocation3], 0
    %9 = vsyncpa [#allocation6], 0
    %10 = vsyncpa [#allocation4], 0
    // Predicated region
    $region2: #{tpu_custom_call.1} parent=1 // pred_check
      _
    $region3: #{tpu_custom_call.1} parent=1 // pred_check_branch
      %12 = sbr.rel (0) target = $region5
    $region4: #{tpu_custom_call.1} parent=1 // pred_region
      %s13 = sadd.s32 0, 0
      %p14 = scmp.lt.s32.totalorder %s13, 0
      %s15 = scalar_select %p14, %s13, 0
      %s16 = smul.u32 2, %s15
      %s18 = ssub.s32 256, 256
      %19 = vsyncadd [#allocation3], %s18
      %s20 = smul.addr %s16, 128
      %s21 = scalar_lea.hbm %s0, %s20
      %s22 = sshll.u32 [#allocation2], 4
      %s23 = int_to_ptr.vmem [resolvable:$true] %s22
      %28 = dma.hbm_to_vmem [thread:$0]  %s21, 256, %s23, [#allocation3], 128, 128, 8
    $region5: #{tpu_custom_call.1} parent=1 // pred_fallthru
      _
    // Predicated region
    $region6: #{tpu_custom_call.1} parent=1 // pred_check
      _
    $region7: #{tpu_custom_call.1} parent=1 // pred_check_branch
      %30 = sbr.rel (0) target = $region9
    $region8: #{tpu_custom_call.1} parent=1 // pred_region
      %s31 = sadd.s32 0, 0
      %p32 = scmp.lt.s32.totalorder %s31, 0
      %s33 = scalar_select %p32, %s31, 0
      %s34 = smul.u32 2, %s33
      %s36 = ssub.s32 256, 256
      %37 = vsyncadd [#allocation6], %s36
      %s38 = smul.addr %s34, 128
      %s39 = scalar_lea.hbm %s1, %s38
      %s40 = sshll.u32 [#allocation5], 4
      %s41 = int_to_ptr.vmem [resolvable:$true] %s40
      %46 = dma.hbm_to_vmem [thread:$0]  %s39, 256, %s41, [#allocation6], 128, 128, 8
    $region9: #{tpu_custom_call.1} parent=1 // pred_fallthru
      _
    // Predicated region
    $region10: #{tpu_custom_call.1} parent=1 // pred_check
      _
    $region11: #{tpu_custom_call.1} parent=1 // pred_check_branch
      %48 = sbr.rel (0) target = $region13
    $region12: #{tpu_custom_call.1} parent=1 // pred_region
      %s49 = sadd.s32 0, 0
      %p50 = scmp.lt.s32.totalorder %s49, 0
      %s51 = scalar_select %p50, %s49, 0
      %s52 = smul.u32 2, %s51
      %s54 = ssub.s32 256, 256
      %55 = vsyncadd [#allocation6], %s54
      %s56 = smul.addr %s52, 128
      %s57 = scalar_lea.hbm %s2, %s56
      %s58 = sshll.u32 [#allocation7], 4
      %s59 = int_to_ptr.vmem [resolvable:$true] %s58
      %64 = dma.hbm_to_vmem [thread:$0]  %s57, 256, %s59, [#allocation6], 128, 128, 8
    $region13: #{tpu_custom_call.1} parent=1 // pred_fallthru
      _
    // Predicated region
    $region14: #{tpu_custom_call.1} parent=1 // pred_check
      _
    $region15: #{tpu_custom_call.1} parent=1 // pred_check_branch
      %66 = sbr.rel (0) target = $region17
    $region16: #{tpu_custom_call.1} parent=1 // pred_region
      %67 = dma.done [#allocation3], 256
    $region17: #{tpu_custom_call.1} parent=1 // pred_fallthru
      _
    // Predicated region
    $region18: #{tpu_custom_call.1} parent=1 // pred_check
      _
    $region19: #{tpu_custom_call.1} parent=1 // pred_check_branch
      %69 = sbr.rel (0) target = $region21
    $region20: #{tpu_custom_call.1} parent=1 // pred_region
      %70 = dma.done [#allocation6], 256
    $region21: #{tpu_custom_call.1} parent=1 // pred_fallthru
      _
    // Predicated region
    $region22: #{tpu_custom_call.1} parent=1 // pred_check
      _
    $region23: #{tpu_custom_call.1} parent=1 // pred_check_branch
      %72 = sbr.rel (0) target = $region25
    $region24: #{tpu_custom_call.1} parent=1 // pred_region
      %73 = dma.done [#allocation6], 256
    $region25: #{tpu_custom_call.1} parent=1 // pred_fallthru
      _
    %s74 = sadd.s32 0, 0
    %p75 = scmp.lt.s32.totalorder %s74, 0
    %s76 = scalar_select %p75, %s74, 0
    %s77 = smul.u32 2, %s76
    %s78 = sadd.s32 0, 0
    %p79 = scmp.lt.s32.totalorder %s78, 0
    %s80 = scalar_select %p79, %s78, 0
    %s81 = smul.u32 2, %s80
    %s82 = sadd.s32 0, 0
    %p83 = scmp.lt.s32.totalorder %s82, 0
    %s84 = scalar_select %p83, %s82, 0
    %s85 = smul.u32 2, %s84
    %p86 = scmp.eq.s32.totalorder 0, 0
    // Predicated region
    $region26: #{tpu_custom_call.1} parent=1 // pred_check
      %p87 = pneg %p86
    $region27: #{tpu_custom_call.1} parent=1 // pred_check_branch
      %89 = sbr.rel (%p87) target = $region29
    $region28: #{tpu_custom_call.1} parent=1 // pred_region
      %90 = vst [vmem:[#allocation8] sm:$0xff] 0.0
    $region29: #{tpu_custom_call.1} parent=1 // pred_fallthru
      _
    %v91 = vld [vmem:[#allocation2] sm:$0xff]
    %v92 = vld [vmem:[#allocation2 + $0x8] sm:$0xff]
    %v93 = vld [vmem:[#allocation5] sm:$0xff]
    %v94 = vld [vmem:[#allocation5 + $0x8] sm:$0xff]
    %v95 = vld [vmem:[#allocation7] sm:$0xff]
    %v96 = vld [vmem:[#allocation7 + $0x8] sm:$0xff]
    %v97 = vsub.f32 1.0, %v95
    %v98 = vsub.f32 1.0, %v96
    %v99 = vmax.f32 %v91, 0.0
    %v100 = vmax.f32 %v92, 0.0
    %v101 = vmul.f32 %v91, %v93
    %v102 = vmul.f32 %v92, %v94
    %v103 = vsub.f32 %v99, %v101
    %v104 = vsub.f32 %v100, %v102
    %v105 = vand.u32 2147483647, %v91
    %v106 = vand.u32 2147483647, %v92
    %v107 = vsub.f32 0.0, %v105
    %v108 = vsub.f32 0.0, %v106
    %v109 = vmul.f32 %v107, 1.442695
    %v110 = vpow.pop %v109
    %v111 = vmul.f32 %v108, 1.442695
    %v112 = vpow.pop %v111
    %v113 = vadd.f32 %v110, 1.0
    %v114 = vlog2.pop %v113
    %v115 = vmul.f32 %v114, 0.6931472
    %v116 = vmul.f32 -0.5, %v110
    %v117 = vadd.f32 %v116, 1.0
    %v118 = vmul.f32 %v117, %v110
    %v119 = vand.u32 2147483647, %v110
    %vm120 = vcmp.lt.f32.partialorder %v119, 0.0004427343
    %v121 = vsel %vm120, %v118, %v115
    %v122 = vadd.f32 %v112, 1.0
    %v123 = vlog2.pop %v122
    %v124 = vmul.f32 %v123, 0.6931472
    %v125 = vmul.f32 -0.5, %v112
    %v126 = vadd.f32 %v125, 1.0
    %v127 = vmul.f32 %v126, %v112
    %v128 = vand.u32 2147483647, %v112
    %vm129 = vcmp.lt.f32.partialorder %v128, 0.0004427343
    %v130 = vsel %vm129, %v127, %v124
    %v131 = vadd.f32 %v103, %v121
    %v132 = vadd.f32 %v104, %v130
    %v133 = vmul.f32 %v97, %v131
    %v134 = vmul.f32 %v98, %v132
    %v135 = vld [vmem:[#allocation8] sm:$0xff]
    %v136 = vadd.f32 %v133, %v134
    %v137 = vadd.f32 %v135, %v136
    %138 = vst [vmem:[#allocation8] sm:$0xff] %v137
    // Predicated region
    $region30: #{tpu_custom_call.1} parent=1 // pred_check
      _
    $region31: #{tpu_custom_call.1} parent=1 // pred_check_branch
      %140 = sbr.rel (0) target = $region33
    $region32: #{tpu_custom_call.1} parent=1 // pred_region
      %s142 = ssub.s32 128, 128
      %143 = vsyncadd [#allocation4], %s142
      %s145 = sshll.u32 [#allocation8], 4
      %s146 = int_to_ptr.vmem [resolvable:$true] %s145
      %148 = dma.vmem_to_hbm [thread:$0]  %s146, 128, %s3, [#allocation4]
    $region33: #{tpu_custom_call.1} parent=1 // pred_fallthru
      _
    // Predicated region
    $region34: #{tpu_custom_call.1} parent=1 // pred_check
      _
    $region35: #{tpu_custom_call.1} parent=1 // pred_check_branch
      %150 = sbr.rel (0) target = $region37
    $region36: #{tpu_custom_call.1} parent=1 // pred_region
      %151 = dma.done [#allocation4], 128
    $region37: #{tpu_custom_call.1} parent=1 // pred_fallthru
      _
    %152 = vsyncpa [#allocation3], 1
    %153 = vsyncpa [#allocation6], 1
    %154 = vsyncpa [#allocation4], 1

</llo_original>
